<compile_context>
chip_gen: v7x
topology: tpu7x:2x2x1
jax: 0.10.0
libtpu: 0.0.40
codegen_flags: <defaults>
</compile_context>

<pallas_src>
import jax
import jax.numpy as jnp
from jax.experimental import pallas as pl
from jax.experimental.pallas import tpu as pltpu


def _physics_kernel(ts_ref, mol_ref, feat_ref, out_ref):
    # ts_ref   : SMEM (1,)          float32   (time_step)
    # mol_ref  : VMEM (4,  TR, 128) float32   [JLA, JK, JVA, JVB]
    # feat_ref : VMEM (10, TR, 128) float32   [T, V, E, VF, VA, VB, CFLA, CFK, CALA, CBK]
    # out_ref  : VMEM (10, TR, 128) float32
    ts = ts_ref[0]

    feat = feat_ref[...]           # (10, TR, 128) — each plane is a dense vreg slab
    mol = mol_ref[...]             # (4,  TR, 128)

    VF, VA, VB = feat[3], feat[4], feat[5]
    CFLA, CFK, CALA, CBK = feat[6], feat[7], feat[8], feat[9]
    JLA, JK, JVA, JVB = mol[0], mol[1], mol[2], mol[3]

    # deltas over one time step
    dLA = JLA * ts
    dK = JK * ts
    dVA = JVA * ts
    dVB = JVB * ts

    # volume update
    nVF = VF - dVA - dVB
    nVA = VA + dVA
    nVB = VB + dVB

    # mole update (moles = conc * volume) and concentration update
    eps = jnp.float32(1e-06)
    inv_nVF = 1.0 / (nVF + eps)    # reused for both fresh-side species
    inv_nVA = 1.0 / (nVA + eps)
    inv_nVB = 1.0 / (nVB + eps)

    nCFLA = (CFLA * VF - dLA) * inv_nVF
    nCFK = (CFK * VF - dK) * inv_nVF
    nCALA = (CALA * VA + dLA) * inv_nVA
    nCBK = (CBK * VB + dK) * inv_nVB

    # [T, V, E, nCFLA, nCFK, nCALA, nCBK, nVF, nVA, nVB] — single full-block store.
    out_ref[...] = jnp.concatenate(
        [feat[0:3],
         nCFLA[None], nCFK[None], nCALA[None], nCBK[None],
         nVF[None], nVA[None], nVB[None]],
        axis=0,
    )


def physics_layer_feature_major(mol_fm, feat_fm, time_step=0.1, max_block_rows=1024):
    """Preferred fast path: feature-major inputs, no transposes.

    mol_fm  : (4, N)  float32, N % 128 == 0
    feat_fm : (10, N) float32
    returns : (10, N) float32
    """
    assert mol_fm.shape[0] == 4 and feat_fm.shape[0] == 10
    n = feat_fm.shape[1]
    assert mol_fm.shape[1] == n
    assert n % 128 == 0, "sample count must be a multiple of 128 (pad upstream)"
    assert max_block_rows % 8 == 0

    r = n // 128
    # Free reshapes (no data movement): samples land on (sublane, lane) densely.
    mol3 = mol_fm.reshape(4, r, 128)
    feat3 = feat_fm.reshape(10, r, 128)

    tr = r if r <= max_block_rows else max_block_rows
    grid = (pl.cdiv(r, tr),)

    # Exact block footprint (no sublane padding in the 3-D layout); x2 for the
    # double buffers plus ~50% headroom, capped at 48 MiB to leave room on
    # v7x's 64 MiB physical VMEM (v5e/v6e have 128 MiB, so this is safe there).
    block_bytes = (10 + 4 + 10) * tr * 128 * 4
    vmem_limit = min(48 << 20, max(32 << 20, 3 * block_bytes))

    ts = jnp.full((1,), time_step, dtype=jnp.float32)

    out3 = pl.pallas_call(
        _physics_kernel,
        out_shape=jax.ShapeDtypeStruct((10, r, 128), feat_fm.dtype),
        grid_spec=pltpu.PrefetchScalarGridSpec(
            num_scalar_prefetch=0,
            grid=grid,
            in_specs=[
                pl.BlockSpec(memory_space=pltpu.MemorySpace.SMEM),     # time_step
                pl.BlockSpec((4, tr, 128), lambda i: (0, i, 0)),
                pl.BlockSpec((10, tr, 128), lambda i: (0, i, 0)),
            ],
            out_specs=pl.BlockSpec((10, tr, 128), lambda i: (0, i, 0)),
        ),
        compiler_params=pltpu.CompilerParams(
            # NOTE(v7x): plain "parallel" does not guarantee a 2-TensorCore
            # split; use pltpu.CORE_PARALLEL / pl.core_map there after checking
            # xprof. Kept portable across v5e/v6e/v7x here.
            dimension_semantics=("parallel",),
            vmem_limit_bytes=vmem_limit,
        ),
    )(ts, mol3, feat3)

    return out3.reshape(10, n)


def physics_layer(mol_changes, features, time_step=0.1, max_block_rows=1024):
    """PyTorch-layout convenience wrapper.

    mol_changes : (..., 4) float32
    features    : (..., 10) float32
    returns     : (..., 10) float32

    NOTE: this path pays one transpose per array (extra HBM traffic for a
    memory-bound op).  Keep the surrounding model feature-major and call
    physics_layer_feature_major directly for peak performance.
    """
    assert mol_changes.shape[:-1] == features.shape[:-1]
    assert mol_changes.shape[-1] == 4 and features.shape[-1] == 10

    lead_shape = features.shape[:-1]
    n = 1
    for d in lead_shape:
        n *= int(d)

    mol_fm = mol_changes.reshape(n, 4).T       # (4, N)
    feat_fm = features.reshape(n, 10).T        # (10, N)

    n_pad = ((n + 127) // 128) * 128
    if n_pad != n:
        pad = ((0, 0), (0, n_pad - n))
        mol_fm = jnp.pad(mol_fm, pad)
        feat_fm = jnp.pad(feat_fm, pad)

    out_fm = physics_layer_feature_major(mol_fm, feat_fm, time_step, max_block_rows)
    return out_fm[:, :n].T.reshape(lead_shape + (10,))


def _physics_ref(mol_changes, features, time_step=0.1):
    """Pure-JAX reference mirroring the PyTorch forward (sample-major layout)."""
    T = features[..., 0:1]; V = features[..., 1:2]; E = features[..., 2:3]
    VF = features[..., 3:4]; VA = features[..., 4:5]; VB = features[..., 5:6]
    CFLA = features[..., 6:7]; CFK = features[..., 7:8]
    CALA = features[..., 8:9]; CBK = features[..., 9:10]
    NFLA = CFLA * VF; NFK = CFK * VF; NALA = CALA * VA; NBK = CBK * VB
    JLA = mol_changes[..., 0:1]; JK = mol_changes[..., 1:2]
    JVA = mol_changes[..., 2:3]; JVB = mol_changes[..., 3:4]
    dLA = JLA * time_step; dK = JK * time_step
    dVA = JVA * time_step; dVB = JVB * time_step
    nVF = VF - dVA - dVB; nVA = VA + dVA; nVB = VB + dVB
    nNFLA = NFLA - dLA; nNFK = NFK - dK; nNALA = NALA + dLA; nNBK = NBK + dK
    eps = 1e-06
    nCFLA = nNFLA / (nVF + eps); nCFK = nNFK / (nVF + eps)
    nCALA = nNALA / (nVA + eps); nCBK = nNBK / (nVB + eps)
    return jnp.concatenate(
        [T, V, E, nCFLA, nCFK, nCALA, nCBK, nVF, nVA, nVB], axis=-1
    )


if __name__ == "__main__":
    key = jax.random.PRNGKey(0)
    k1, k2, k3, k4 = jax.random.split(key, 4)

    # --- original PyTorch-layout API, small shape (batch=2, seq=8) ---
    B, S = 2, 8
    mol = jax.random.normal(k1, (B, S, 4), dtype=jnp.float32)
    feat = jax.random.uniform(k2, (B, S, 10), dtype=jnp.float32, minval=0.5, maxval=2.0)
    out = jax.block_until_ready(physics_layer(mol, feat, time_step=0.1))
    ref = _physics_ref(mol, feat, time_step=0.1)
    assert out.shape == (B, S, 10)
    assert jnp.allclose(out, ref, rtol=1e-5, atol=1e-5), "mismatch vs reference (std layout)"

    # --- feature-major fast path: multi-block grid with a partial trailing block ---
    N = 128 * 13            # r = 13 rows of 128 lanes; tr = 8 -> grid 2, last block partial
    mol_fm = jax.random.normal(k3, (4, N), dtype=jnp.float32)
    feat_fm = jax.random.uniform(k4, (10, N), dtype=jnp.float32, minval=0.5, maxval=2.0)
    out_fm = jax.block_until_ready(
        physics_layer_feature_major(mol_fm, feat_fm, time_step=0.05, max_block_rows=8)
    )
    ref_fm = _physics_ref(mol_fm.T, feat_fm.T, time_step=0.05).T
    assert out_fm.shape == (10, N)
    assert jnp.allclose(out_fm, ref_fm, rtol=1e-5, atol=1e-5), "mismatch vs reference (fmajor)"

    print("KERNEL_OK")
</pallas_src>

<mosaic_0001>
module attributes {stable_mosaic.version = 11 : i64} {
  func.func @_physics_kernel(%arg0: i32, %arg1: memref<1xf32, #tpu.memory_space<smem>>, %arg2: memref<4x1x128xf32, #tpu.memory_space<vmem>>, %arg3: memref<10x1x128xf32, #tpu.memory_space<vmem>>, %arg4: memref<10x1x128xf32, #tpu.memory_space<vmem>>) attributes {dimension_semantics = [#tpu.dimension_semantics<parallel>], iteration_bounds = array<i64: 1>, scalar_prefetch = 0 : i64, scratch_operands = 0 : i64, tpu.core_type = #tpu.core_type<tc>, window_params = [{transform_indices = @transform_0, window_bounds = array<i64: 1>}, {transform_indices = @transform_1, window_bounds = array<i64: 4, 1, 128>}, {transform_indices = @transform_2, window_bounds = array<i64: 10, 1, 128>}, {transform_indices = @transform_3, window_bounds = array<i64: 10, 1, 128>}]} {
    %c0 = arith.constant 0 : index
    %0 = memref.load %arg1[%c0] : memref<1xf32, #tpu.memory_space<smem>>
    %c0_0 = arith.constant 0 : index
    %c0_1 = arith.constant 0 : index
    %c0_2 = arith.constant 0 : index
    %1 = vector.load %arg3[%c0_0, %c0_1, %c0_2] : memref<10x1x128xf32, #tpu.memory_space<vmem>>, vector<10x1x128xf32>
    %c0_3 = arith.constant 0 : index
    %c0_4 = arith.constant 0 : index
    %c0_5 = arith.constant 0 : index
    %2 = vector.load %arg2[%c0_3, %c0_4, %c0_5] : memref<4x1x128xf32, #tpu.memory_space<vmem>>, vector<4x1x128xf32>
    %3 = vector.extract_strided_slice %1 {offsets = [3, 0, 0], sizes = [1, 1, 128], strides = [1, 1, 1]} : vector<10x1x128xf32> to vector<1x1x128xf32>
    %4 = vector.shape_cast %3 : vector<1x1x128xf32> to vector<1x128xf32>
    %5 = vector.extract_strided_slice %1 {offsets = [4, 0, 0], sizes = [1, 1, 128], strides = [1, 1, 1]} : vector<10x1x128xf32> to vector<1x1x128xf32>
    %6 = vector.shape_cast %5 : vector<1x1x128xf32> to vector<1x128xf32>
    %7 = vector.extract_strided_slice %1 {offsets = [5, 0, 0], sizes = [1, 1, 128], strides = [1, 1, 1]} : vector<10x1x128xf32> to vector<1x1x128xf32>
    %8 = vector.shape_cast %7 : vector<1x1x128xf32> to vector<1x128xf32>
    %9 = vector.extract_strided_slice %1 {offsets = [6, 0, 0], sizes = [1, 1, 128], strides = [1, 1, 1]} : vector<10x1x128xf32> to vector<1x1x128xf32>
    %10 = vector.shape_cast %9 : vector<1x1x128xf32> to vector<1x128xf32>
    %11 = vector.extract_strided_slice %1 {offsets = [7, 0, 0], sizes = [1, 1, 128], strides = [1, 1, 1]} : vector<10x1x128xf32> to vector<1x1x128xf32>
    %12 = vector.shape_cast %11 : vector<1x1x128xf32> to vector<1x128xf32>
    %13 = vector.extract_strided_slice %1 {offsets = [8, 0, 0], sizes = [1, 1, 128], strides = [1, 1, 1]} : vector<10x1x128xf32> to vector<1x1x128xf32>
    %14 = vector.shape_cast %13 : vector<1x1x128xf32> to vector<1x128xf32>
    %15 = vector.extract_strided_slice %1 {offsets = [9, 0, 0], sizes = [1, 1, 128], strides = [1, 1, 1]} : vector<10x1x128xf32> to vector<1x1x128xf32>
    %16 = vector.shape_cast %15 : vector<1x1x128xf32> to vector<1x128xf32>
    %17 = vector.extract_strided_slice %2 {offsets = [0, 0, 0], sizes = [1, 1, 128], strides = [1, 1, 1]} : vector<4x1x128xf32> to vector<1x1x128xf32>
    %18 = vector.shape_cast %17 : vector<1x1x128xf32> to vector<1x128xf32>
    %19 = vector.extract_strided_slice %2 {offsets = [1, 0, 0], sizes = [1, 1, 128], strides = [1, 1, 1]} : vector<4x1x128xf32> to vector<1x1x128xf32>
    %20 = vector.shape_cast %19 : vector<1x1x128xf32> to vector<1x128xf32>
    %21 = vector.extract_strided_slice %2 {offsets = [2, 0, 0], sizes = [1, 1, 128], strides = [1, 1, 1]} : vector<4x1x128xf32> to vector<1x1x128xf32>
    %22 = vector.shape_cast %21 : vector<1x1x128xf32> to vector<1x128xf32>
    %23 = vector.extract_strided_slice %2 {offsets = [3, 0, 0], sizes = [1, 1, 128], strides = [1, 1, 1]} : vector<4x1x128xf32> to vector<1x1x128xf32>
    %24 = vector.shape_cast %23 : vector<1x1x128xf32> to vector<1x128xf32>
    %25 = vector.broadcast %0 : f32 to vector<1x128xf32>
    %26 = arith.mulf %18, %25 : vector<1x128xf32>
    %27 = vector.broadcast %0 : f32 to vector<1x128xf32>
    %28 = arith.mulf %20, %27 : vector<1x128xf32>
    %29 = vector.broadcast %0 : f32 to vector<1x128xf32>
    %30 = arith.mulf %22, %29 : vector<1x128xf32>
    %31 = vector.broadcast %0 : f32 to vector<1x128xf32>
    %32 = arith.mulf %24, %31 : vector<1x128xf32>
    %33 = arith.subf %4, %30 : vector<1x128xf32>
    %34 = arith.subf %33, %32 : vector<1x128xf32>
    %35 = arith.addf %6, %30 : vector<1x128xf32>
    %36 = arith.addf %8, %32 : vector<1x128xf32>
    %cst = arith.constant 9.99999997E-7 : f32
    %37 = vector.broadcast %cst : f32 to vector<1x128xf32>
    %38 = arith.addf %34, %37 : vector<1x128xf32>
    %cst_6 = arith.constant 1.000000e+00 : f32
    %39 = vector.broadcast %cst_6 : f32 to vector<1x128xf32>
    %40 = arith.divf %39, %38 : vector<1x128xf32>
    %cst_7 = arith.constant 9.99999997E-7 : f32
    %41 = vector.broadcast %cst_7 : f32 to vector<1x128xf32>
    %42 = arith.addf %35, %41 : vector<1x128xf32>
    %cst_8 = arith.constant 1.000000e+00 : f32
    %43 = vector.broadcast %cst_8 : f32 to vector<1x128xf32>
    %44 = arith.divf %43, %42 : vector<1x128xf32>
    %cst_9 = arith.constant 9.99999997E-7 : f32
    %45 = vector.broadcast %cst_9 : f32 to vector<1x128xf32>
    %46 = arith.addf %36, %45 : vector<1x128xf32>
    %cst_10 = arith.constant 1.000000e+00 : f32
    %47 = vector.broadcast %cst_10 : f32 to vector<1x128xf32>
    %48 = arith.divf %47, %46 : vector<1x128xf32>
    %49 = arith.mulf %10, %4 : vector<1x128xf32>
    %50 = arith.subf %49, %26 : vector<1x128xf32>
    %51 = arith.mulf %50, %40 : vector<1x128xf32>
    %52 = arith.mulf %12, %4 : vector<1x128xf32>
    %53 = arith.subf %52, %28 : vector<1x128xf32>
    %54 = arith.mulf %53, %40 : vector<1x128xf32>
    %55 = arith.mulf %14, %6 : vector<1x128xf32>
    %56 = arith.addf %55, %26 : vector<1x128xf32>
    %57 = arith.mulf %56, %44 : vector<1x128xf32>
    %58 = arith.mulf %16, %8 : vector<1x128xf32>
    %59 = arith.addf %58, %28 : vector<1x128xf32>
    %60 = arith.mulf %59, %48 : vector<1x128xf32>
    %61 = vector.extract_strided_slice %1 {offsets = [0, 0, 0], sizes = [3, 1, 128], strides = [1, 1, 1]} : vector<10x1x128xf32> to vector<3x1x128xf32>
    %62 = vector.shape_cast %51 : vector<1x128xf32> to vector<1x1x128xf32>
    %63 = vector.shape_cast %54 : vector<1x128xf32> to vector<1x1x128xf32>
    %64 = vector.shape_cast %57 : vector<1x128xf32> to vector<1x1x128xf32>
    %65 = vector.shape_cast %60 : vector<1x128xf32> to vector<1x1x128xf32>
    %66 = vector.shape_cast %34 : vector<1x128xf32> to vector<1x1x128xf32>
    %67 = vector.shape_cast %35 : vector<1x128xf32> to vector<1x1x128xf32>
    %68 = vector.shape_cast %36 : vector<1x128xf32> to vector<1x1x128xf32>
    %69 = tpu.concatenate %61, %62, %63, %64, %65, %66, %67, %68 in 0 : vector<3x1x128xf32>, vector<1x1x128xf32>, vector<1x1x128xf32>, vector<1x1x128xf32>, vector<1x1x128xf32>, vector<1x1x128xf32>, vector<1x1x128xf32>, vector<1x1x128xf32> -> vector<10x1x128xf32>
    %c0_11 = arith.constant 0 : index
    %c0_12 = arith.constant 0 : index
    %c0_13 = arith.constant 0 : index
    %70 = vector.load %arg4[%c0_11, %c0_12, %c0_13] : memref<10x1x128xf32, #tpu.memory_space<vmem>>, vector<10x1x128xf32>
    tpu.vector_store %arg4[%c0_11, %c0_12, %c0_13], %69 {strides = array<i32>} : memref<10x1x128xf32, #tpu.memory_space<vmem>>, vector<10x1x128xf32>,
    return
  }
  func.func @transform_0(%arg0: i32) -> i32 {
    %c0_i32 = arith.constant 0 : i32
    %c0_i32_0 = arith.constant 0 : i32
    return %c0_i32 : i32
  }
  func.func @transform_1(%arg0: i32) -> (i32, i32, i32) {
    %c0_i32 = arith.constant 0 : i32
    %c0_i32_0 = arith.constant 0 : i32
    %c0_i32_1 = arith.constant 0 : i32
    return %c0_i32, %arg0, %c0_i32_0 : i32, i32, i32
  }
  func.func @transform_2(%arg0: i32) -> (i32, i32, i32) {
    %c0_i32 = arith.constant 0 : i32
    %c0_i32_0 = arith.constant 0 : i32
    %c0_i32_1 = arith.constant 0 : i32
    return %c0_i32, %arg0, %c0_i32_0 : i32, i32, i32
  }
  func.func @transform_3(%arg0: i32) -> (i32, i32, i32) {
    %c0_i32 = arith.constant 0 : i32
    %c0_i32_0 = arith.constant 0 : i32
    %c0_i32_1 = arith.constant 0 : i32
    return %c0_i32, %arg0, %c0_i32_0 : i32, i32, i32
  }
}

</mosaic_0001>

<llo_original>
// kernel: tpu_custom_call.1
$region0: #{tpu_custom_call.1}
  #allocation0 [shape = 'u32[]', space=smem, size = 0x4, offset = 0x4, fixed_abs, tag = 'smem constant byte address 0x4 - core index']
  #allocation1 [shape = 'u32[144,128]{1,0:T(1,128)}', space=vmem, size = 0x12000, scoped, tag = 'internal scratch']
  #allocation2 [shape = 'f32[1]{0:T(128)S(6)}', space=smem, size = 0x200, scoped, tag = 'scoped memory for tpu_custom_call.1']
  %s0 = inlined_call_operand.<no memory space> [shape: f32[1], index: 0, kind: input, shape index: {}]
  %s1 = inlined_call_operand.hbm [shape: f32[4,1,128], index: 1, kind: input, shape index: {}]
  %s2 = inlined_call_operand.hbm [shape: f32[10,1,128], index: 2, kind: input, shape index: {}]
  %s3 = inlined_call_operand.hbm [shape: f32[10,1,128], index: 3, kind: output, shape index: {}]
  %s4 = sld [smem:[#allocation0]]
  $region30: #{tpu_custom_call.1} parent=0
    _
  %s6 = ssub.s32 1, %s4
  %s7 = scalar_select 0, %s6, %s4
  %8 = sst [smem:[#allocation2]] %s0
  $region1: #{tpu_custom_call.1} parent=0
    #allocation3 [shape = 'u8[2048]{0}', space=vmem, size = 0x800, scoped, tag = 'input window, operand 1, single buffered']
    #allocation4 [shape = 's32[1]{0}', space=sflag, size = 0x4, scoped, tag = 'scoped memory for tpu_custom_call.1']
    #allocation5 [shape = 's32[1]{0}', space=sflag, size = 0x4, scoped, tag = 'scoped memory for tpu_custom_call.1']
    #allocation6 [shape = 'u8[5120]{0}', space=vmem, size = 0x1400, scoped, tag = 'input window, operand 2, single buffered']
    #allocation7 [shape = 's32[1]{0}', space=sflag, size = 0x4, scoped, tag = 'scoped memory for tpu_custom_call.1']
    #allocation8 [shape = 'u8[5120]{0}', space=vmem, size = 0x1400, scoped, tag = 'output window, operand 0, single buffered']
    %9 = vsyncpa [#allocation4], 0
    %10 = vsyncpa [#allocation7], 0
    %11 = vsyncpa [#allocation5], 0
    // Predicated region
    $region2: #{tpu_custom_call.1} parent=1 // pred_check
      _
    $region3: #{tpu_custom_call.1} parent=1 // pred_check_branch
      %13 = sbr.rel (0) target = $region5
    $region4: #{tpu_custom_call.1} parent=1 // pred_region
      _
    $region5: #{tpu_custom_call.1} parent=1 // pred_fallthru
      _
    // Predicated region
    $region6: #{tpu_custom_call.1} parent=1 // pred_check
      _
    $region7: #{tpu_custom_call.1} parent=1 // pred_check_branch
      %15 = sbr.rel (0) target = $region9
    $region8: #{tpu_custom_call.1} parent=1 // pred_region
      %s17 = ssub.s32 64, 64
      %18 = vsyncadd [#allocation4], %s17
      %s19 = sshll.u32 [#allocation3], 4
      %s20 = int_to_ptr.vmem [resolvable:$true] %s19
      %25 = dma.hbm_to_vmem [thread:$0]  %s1, 64, %s20, [#allocation4], 16, 16, 1
    $region9: #{tpu_custom_call.1} parent=1 // pred_fallthru
      _
    // Predicated region
    $region10: #{tpu_custom_call.1} parent=1 // pred_check
      _
    $region11: #{tpu_custom_call.1} parent=1 // pred_check_branch
      %27 = sbr.rel (0) target = $region13
    $region12: #{tpu_custom_call.1} parent=1 // pred_region
      %s29 = ssub.s32 160, 160
      %30 = vsyncadd [#allocation7], %s29
      %s31 = sshll.u32 [#allocation6], 4
      %s32 = int_to_ptr.vmem [resolvable:$true] %s31
      %37 = dma.hbm_to_vmem [thread:$0]  %s2, 160, %s32, [#allocation7], 16, 16, 1
    $region13: #{tpu_custom_call.1} parent=1 // pred_fallthru
      _
    // Predicated region
    $region14: #{tpu_custom_call.1} parent=1 // pred_check
      _
    $region15: #{tpu_custom_call.1} parent=1 // pred_check_branch
      %39 = sbr.rel (0) target = $region17
    $region16: #{tpu_custom_call.1} parent=1 // pred_region
      %40 = dma.done [#allocation4], 64
    $region17: #{tpu_custom_call.1} parent=1 // pred_fallthru
      _
    // Predicated region
    $region18: #{tpu_custom_call.1} parent=1 // pred_check
      _
    $region19: #{tpu_custom_call.1} parent=1 // pred_check_branch
      %42 = sbr.rel (0) target = $region21
    $region20: #{tpu_custom_call.1} parent=1 // pred_region
      %43 = dma.done [#allocation7], 160
    $region21: #{tpu_custom_call.1} parent=1 // pred_fallthru
      _
    %s44 = sld [smem:[#allocation2]]
    %v45 = vld [vmem:[#allocation6] sm:$0x1]
    %v46 = vld [vmem:[#allocation6 + $0x1] sm:$0x1]
    %v47 = vld [vmem:[#allocation6 + $0x2] sm:$0x1]
    %v48 = vld [vmem:[#allocation6 + $0x3] sm:$0x1]
    %v49 = vld [vmem:[#allocation6 + $0x4] sm:$0x1]
    %v50 = vld [vmem:[#allocation6 + $0x5] sm:$0x1]
    %v51 = vld [vmem:[#allocation6 + $0x6] sm:$0x1]
    %v52 = vld [vmem:[#allocation6 + $0x7] sm:$0x1]
    %v53 = vld [vmem:[#allocation6 + $0x8] sm:$0x1]
    %v54 = vld [vmem:[#allocation6 + $0x9] sm:$0x1]
    %v55 = vld [vmem:[#allocation3] sm:$0x1]
    %v56 = vld [vmem:[#allocation3 + $0x1] sm:$0x1]
    %v57 = vld [vmem:[#allocation3 + $0x2] sm:$0x1]
    %v58 = vld [vmem:[#allocation3 + $0x3] sm:$0x1]
    %v59 = vstv %s44
    %v60 = vmul.f32 %v55, %v59
    %v61 = vmul.f32 %v56, %v59
    %v62 = vmul.f32 %v57, %v59
    %v63 = vmul.f32 %v58, %v59
    %v64 = vsub.f32 %v48, %v62
    %v65 = vsub.f32 %v64, %v63
    %v66 = vadd.f32 %v49, %v62
    %v67 = vadd.f32 %v50, %v63
    %v68 = vadd.f32 %v65, 1e-06
    %v69 = vrcp.pop %v68
    %v70 = vmul.f32 1.0, %v69
    %v71 = vadd.f32 %v66, 1e-06
    %v72 = vrcp.pop %v71
    %v73 = vmul.f32 1.0, %v72
    %v74 = vadd.f32 %v67, 1e-06
    %v75 = vrcp.pop %v74
    %v76 = vmul.f32 1.0, %v75
    %v77 = vmul.f32 %v51, %v48
    %v78 = vsub.f32 %v77, %v60
    %v79 = vmul.f32 %v78, %v70
    %v80 = vmul.f32 %v52, %v48
    %v81 = vsub.f32 %v80, %v61
    %v82 = vmul.f32 %v81, %v70
    %v83 = vmul.f32 %v53, %v49
    %v84 = vadd.f32 %v83, %v60
    %v85 = vmul.f32 %v84, %v73
    %v86 = vmul.f32 %v54, %v50
    %v87 = vadd.f32 %v86, %v61
    %v88 = vmul.f32 %v87, %v76
    %89 = vst [vmem:[#allocation8] sm:$0x1] %v45
    %90 = vst [vmem:[#allocation8 + $0x1] sm:$0x1] %v46
    %91 = vst [vmem:[#allocation8 + $0x2] sm:$0x1] %v47
    %92 = vst [vmem:[#allocation8 + $0x3] sm:$0x1] %v79
    %93 = vst [vmem:[#allocation8 + $0x4] sm:$0x1] %v82
    %94 = vst [vmem:[#allocation8 + $0x5] sm:$0x1] %v85
    %95 = vst [vmem:[#allocation8 + $0x6] sm:$0x1] %v88
    %96 = vst [vmem:[#allocation8 + $0x7] sm:$0x1] %v65
    %97 = vst [vmem:[#allocation8 + $0x8] sm:$0x1] %v66
    %98 = vst [vmem:[#allocation8 + $0x9] sm:$0x1] %v67
    // Predicated region
    $region22: #{tpu_custom_call.1} parent=1 // pred_check
      _
    $region23: #{tpu_custom_call.1} parent=1 // pred_check_branch
      %100 = sbr.rel (0) target = $region25
    $region24: #{tpu_custom_call.1} parent=1 // pred_region
      %s102 = ssub.s32 160, 160
      %103 = vsyncadd [#allocation5], %s102
      %s104 = sshll.u32 [#allocation8], 4
      %s105 = int_to_ptr.vmem [resolvable:$true] %s104
      %110 = dma.vmem_to_hbm [thread:$0]  %s105, 160, %s3, [#allocation5], 16, 16, 1
    $region25: #{tpu_custom_call.1} parent=1 // pred_fallthru
      _
    // Predicated region
    $region26: #{tpu_custom_call.1} parent=1 // pred_check
      _
    $region27: #{tpu_custom_call.1} parent=1 // pred_check_branch
      %112 = sbr.rel (0) target = $region29
    $region28: #{tpu_custom_call.1} parent=1 // pred_region
      %113 = dma.done [#allocation5], 160
    $region29: #{tpu_custom_call.1} parent=1 // pred_fallthru
      _
    %114 = vsyncpa [#allocation4], 1
    %115 = vsyncpa [#allocation7], 1
    %116 = vsyncpa [#allocation5], 1

</llo_original>
